<compile_context>
chip_gen: v6e
topology: v6e:2x2x1
jax: 0.10.0
libtpu: 0.0.40
codegen_flags: <defaults>
</compile_context>

<pallas_src>
import functools
import math

import jax
import jax.numpy as jnp
from jax.experimental import pallas as pl
from jax.experimental.pallas import tpu as pltpu


LN_EPS = 1e-12
MASK_NEG = -1e9                 # large finite negative (avoids -inf/NaN edge cases)


def _pick_tile(dim, target):
    """Largest 128-multiple divisor of `dim` that is <= target, else full dim."""
    # TODO(synk): for awkward (non 128-multiple) B*S, pad M in the wrapper instead of
    # falling back to the full dimension.
    if dim <= target:
        return dim
    for t in range(target, 127, -128):
        if dim % t == 0:
            return t
    return dim


def _vmem_limit(*block_bytes, scratch=0):
    """Footprint-derived vmem_limit_bytes: 2x (double-buffer) per pipelined block plus
    scratch, then 2x headroom for compiler-internal scratch/spill, clamped to
    [16 MiB, 56 MiB].  56 MiB stays under v7x's 64 MiB physical VMEM per TC; v5e/v6e
    have 128 MiB so the clamp is never binding there."""
    est = 2 * sum(block_bytes) + scratch
    return int(min(max(2 * est, 16 * 1024 * 1024), 56 * 1024 * 1024))


# ----------------------------- kernel helpers -------------------------------

def _gelu(y):
    # TODO(synk): HF BERT default hidden_act="gelu" is exact erf-GELU; tanh approximation
    # used since erf lowering is not guaranteed in Mosaic (small numeric drift).
    c = 0.7978845608028654  # sqrt(2/pi)
    return 0.5 * y * (1.0 + jnp.tanh(c * (y + 0.044715 * y * y * y)))


def _apply_act(y, activation):
    if activation == "tanh":
        return jnp.tanh(y)
    if activation == "gelu":
        return _gelu(y)
    return y


def _ln_rows(y, g, b, eps):
    mean = jnp.mean(y, axis=-1, keepdims=True)
    var = jnp.mean((y - mean) ** 2, axis=-1, keepdims=True)
    inv = jax.lax.rsqrt(var + eps)
    return ((y - mean) * inv) * g + b


# ----------------------------- linear kernels -------------------------------

def _linear_full_k_kernel(x_ref, w_ref, b_ref, o_ref, *, activation):
    """Full-K strip: y = x @ w + b (+act).  No reduction grid axis, no f32
    accumulator round-trip; epilogue writes o_ref directly."""
    y = jnp.dot(x_ref[...], w_ref[...], preferred_element_type=jnp.float32) + b_ref[...]
    o_ref[...] = _apply_act(y, activation).astype(o_ref.dtype)


def _linear_kernel(x_ref, w_ref, b_ref, o_ref, acc_ref, *, activation):
    """Tiled y = x @ w + b (+act).  Grid = (M/tm, N/tn, K/tk), K is reduction."""
    k = pl.program_id(2)

    @pl.when(k == 0)
    def _():
        acc_ref[...] = jnp.zeros_like(acc_ref)

    acc_ref[...] += jnp.dot(x_ref[...], w_ref[...],
                            preferred_element_type=jnp.float32)

    @pl.when(k == pl.num_programs(2) - 1)
    def _():
        o_ref[...] = _apply_act(acc_ref[...] + b_ref[...], activation).astype(o_ref.dtype)


def linear(x, w, b, activation=None, out_dtype=None,
           tm_target=512, tn_target=512, tk_target=1536):
    """x: (M, K) bf16, w: (K, N) bf16, b: (N,) f32 -> (M, N)."""
    M, K = x.shape
    N = w.shape[1]
    out_dtype = out_dtype or x.dtype
    obytes = jnp.dtype(out_dtype).itemsize
    tm, tn, tk = _pick_tile(M, tm_target), _pick_tile(N, tn_target), _pick_tile(K, tk_target)
    bias = b.reshape(1, N).astype(jnp.float32)

    if tk == K:
        # Reduction axis collapsed: 2-D fully-parallel grid, no accumulator scratch.
        vmem = _vmem_limit(tm * K * 2, K * tn * 2, tn * 4, tm * tn * obytes)
        return pl.pallas_call(
            functools.partial(_linear_full_k_kernel, activation=activation),
            out_shape=jax.ShapeDtypeStruct((M, N), out_dtype),
            grid=(M // tm, N // tn),
            in_specs=[
                pl.BlockSpec((tm, K), lambda i, j: (i, 0)),
                pl.BlockSpec((K, tn), lambda i, j: (0, j)),
                pl.BlockSpec((1, tn), lambda i, j: (0, j)),
            ],
            out_specs=pl.BlockSpec((tm, tn), lambda i, j: (i, j)),
            compiler_params=pltpu.CompilerParams(
                dimension_semantics=("parallel", "parallel"),
                vmem_limit_bytes=vmem),
        )(x, w, bias)

    vmem = _vmem_limit(tm * tk * 2, tk * tn * 2, tn * 4, tm * tn * obytes,
                       scratch=tm * tn * 4)
    return pl.pallas_call(
        functools.partial(_linear_kernel, activation=activation),
        out_shape=jax.ShapeDtypeStruct((M, N), out_dtype),
        grid=(M // tm, N // tn, K // tk),
        in_specs=[
            pl.BlockSpec((tm, tk), lambda i, j, k: (i, k)),
            pl.BlockSpec((tk, tn), lambda i, j, k: (k, j)),
            pl.BlockSpec((1, tn), lambda i, j, k: (0, j)),
        ],
        out_specs=pl.BlockSpec((tm, tn), lambda i, j, k: (i, j)),
        scratch_shapes=[pltpu.VMEM((tm, tn), jnp.float32)],
        compiler_params=pltpu.CompilerParams(
            dimension_semantics=("parallel", "parallel", "arbitrary"),
            vmem_limit_bytes=vmem),
    )(x, w, bias)


# ------------------- linear + residual + LayerNorm (fused) ------------------

def _linear_res_ln_full_k_kernel(x_ref, w_ref, b_ref, res_ref, g_ref, bt_ref, o_ref, *, eps):
    """Full-K strip: LayerNorm(x @ w + b + residual).  Grid = (M/tm,)."""
    y = jnp.dot(x_ref[...], w_ref[...], preferred_element_type=jnp.float32)
    y = y + b_ref[...] + res_ref[...].astype(jnp.float32)
    o_ref[...] = _ln_rows(y, g_ref[...], bt_ref[...], eps).astype(o_ref.dtype)


def _linear_res_ln_kernel(x_ref, w_ref, b_ref, res_ref, g_ref, bt_ref, o_ref, acc_ref,
                          *, eps):
    """Tiled LayerNorm(x @ w + b + residual).  Grid = (M/tm, K/tk); N kept whole
    (needed by the row-wise LayerNorm epilogue)."""
    k = pl.program_id(1)

    @pl.when(k == 0)
    def _():
        acc_ref[...] = jnp.zeros_like(acc_ref)

    acc_ref[...] += jnp.dot(x_ref[...], w_ref[...],
                            preferred_element_type=jnp.float32)

    @pl.when(k == pl.num_programs(1) - 1)
    def _():
        y = acc_ref[...] + b_ref[...] + res_ref[...].astype(jnp.float32)
        o_ref[...] = _ln_rows(y, g_ref[...], bt_ref[...], eps).astype(o_ref.dtype)


def linear_res_ln(x, w, b, residual, gamma, beta, out_dtype=None,
                  tm_target=512, tk_target=1536):
    """x: (M, K), w: (K, N), residual: (M, N) -> LayerNorm(x @ w + b + residual)."""
    M, K = x.shape
    N = w.shape[1]
    out_dtype = out_dtype or x.dtype
    obytes = jnp.dtype(out_dtype).itemsize
    tm, tk = _pick_tile(M, tm_target), _pick_tile(K, tk_target)
    args = (x, w, b.reshape(1, N).astype(jnp.float32), residual,
            gamma.reshape(1, N).astype(jnp.float32), beta.reshape(1, N).astype(jnp.float32))
    # TODO(synk): bias/residual/gamma/beta are constant over the reduction axis; mark
    # them pipeline_mode=pl.Buffered(1) (single-buffered) once reliably supported by the
    # top-level pallas_call pipeline -- saves ~tm*N bytes each (matters most on v7x).

    if tk == K:
        vmem = _vmem_limit(tm * K * 2, K * N * 2, N * 4, tm * N * 2, N * 4, N * 4,
                           tm * N * obytes)
        return pl.pallas_call(
            functools.partial(_linear_res_ln_full_k_kernel, eps=LN_EPS),
            out_shape=jax.ShapeDtypeStruct((M, N), out_dtype),
            grid=(M // tm,),
            in_specs=[
                pl.BlockSpec((tm, K), lambda i: (i, 0)),
                pl.BlockSpec((K, N), lambda i: (0, 0)),
                pl.BlockSpec((1, N), lambda i: (0, 0)),
                pl.BlockSpec((tm, N), lambda i: (i, 0)),
                pl.BlockSpec((1, N), lambda i: (0, 0)),
                pl.BlockSpec((1, N), lambda i: (0, 0)),
            ],
            out_specs=pl.BlockSpec((tm, N), lambda i: (i, 0)),
            compiler_params=pltpu.CompilerParams(
                dimension_semantics=("parallel",),
                vmem_limit_bytes=vmem),
        )(*args)

    vmem = _vmem_limit(tm * tk * 2, tk * N * 2, N * 4, tm * N * 2, N * 4, N * 4,
                       tm * N * obytes, scratch=tm * N * 4)
    return pl.pallas_call(
        functools.partial(_linear_res_ln_kernel, eps=LN_EPS),
        out_shape=jax.ShapeDtypeStruct((M, N), out_dtype),
        grid=(M // tm, K // tk),
        in_specs=[
            pl.BlockSpec((tm, tk), lambda i, k: (i, k)),
            pl.BlockSpec((tk, N), lambda i, k: (k, 0)),
            pl.BlockSpec((1, N), lambda i, k: (0, 0)),
            pl.BlockSpec((tm, N), lambda i, k: (i, 0)),
            pl.BlockSpec((1, N), lambda i, k: (0, 0)),
            pl.BlockSpec((1, N), lambda i, k: (0, 0)),
        ],
        out_specs=pl.BlockSpec((tm, N), lambda i, k: (i, 0)),
        scratch_shapes=[pltpu.VMEM((tm, N), jnp.float32)],
        compiler_params=pltpu.CompilerParams(
            dimension_semantics=("parallel", "arbitrary"),
            vmem_limit_bytes=vmem),
    )(*args)


# --------------------- embeddings-sum + LayerNorm (fused) -------------------

def _emb_ln_kernel(we_ref, pe_ref, te_ref, g_ref, b_ref, o_ref, *, eps):
    x = (we_ref[...].astype(jnp.float32)
         + pe_ref[...].astype(jnp.float32)
         + te_ref[...].astype(jnp.float32))
    o_ref[...] = _ln_rows(x, g_ref[...], b_ref[...], eps).astype(o_ref.dtype)


def embed_layernorm(we, pe, te, gamma, beta, out_dtype=jnp.bfloat16):
    """we: (B,S,H) f32 word-emb gather; pe: (S,H); te: (1,H) -> LN(we+pe+te) bf16.
    Fusing the sum avoids materializing an f32 (B*S, H) intermediate in HBM."""
    B, S, H = we.shape
    vmem = _vmem_limit(S * H * 4, S * H * 4, H * 4, H * 4, H * 4, S * H * 2)
    return pl.pallas_call(
        functools.partial(_emb_ln_kernel, eps=LN_EPS),
        out_shape=jax.ShapeDtypeStruct((B, S, H), out_dtype),
        grid=(B,),
        in_specs=[
            pl.BlockSpec((None, S, H), lambda b: (b, 0, 0)),
            pl.BlockSpec((S, H), lambda b: (0, 0)),
            pl.BlockSpec((1, H), lambda b: (0, 0)),
            pl.BlockSpec((1, H), lambda b: (0, 0)),
            pl.BlockSpec((1, H), lambda b: (0, 0)),
        ],
        out_specs=pl.BlockSpec((None, S, H), lambda b: (b, 0, 0)),
        compiler_params=pltpu.CompilerParams(
            dimension_semantics=("parallel",),
            vmem_limit_bytes=vmem),
    )(we, pe, te, gamma.reshape(1, H).astype(jnp.float32),
      beta.reshape(1, H).astype(jnp.float32))


# -------------------------------- attention ---------------------------------

def _attention_kernel(qkv_ref, mask_ref, o_ref, *, num_heads, head_dim, scale):
    """One batch per grid step, all heads resident in the lane-dense (S, 3H) layout.
    Each head's result is stored directly into its output column slice (no concat),
    bounding vreg live ranges and overlapping stores with the next head's MXU work."""
    m = mask_ref[...]                     # (1, S) f32, broadcasts over query rows
    H = num_heads * head_dim
    # TODO(synk): move the head loop onto a grid axis (grid=(B, num_heads), head axis
    # "arbitrary", resident (S,H) output block) once unaligned dynamic lane slicing of
    # head_dim columns lowers cleanly; static per-head slices keep this portable.
    for h in range(num_heads):
        q = qkv_ref[:, h * head_dim:(h + 1) * head_dim]
        k = qkv_ref[:, H + h * head_dim: H + (h + 1) * head_dim]
        v = qkv_ref[:, 2 * H + h * head_dim: 2 * H + (h + 1) * head_dim]
        s = jax.lax.dot_general(q, k, (((1,), (1,)), ((), ())),
                                preferred_element_type=jnp.float32) * scale + m
        s = s - jnp.max(s, axis=-1, keepdims=True)
        p = jnp.exp(s)
        p = p * pl.reciprocal(jnp.sum(p, axis=-1, keepdims=True), approx=True)
        out_h = jnp.dot(p.astype(v.dtype), v, preferred_element_type=jnp.float32)
        o_ref[:, h * head_dim:(h + 1) * head_dim] = out_h.astype(o_ref.dtype)


def attention(qkv, mask, num_heads, head_dim):
    """qkv: (B, S, 3H) bf16; mask: (B, 1, S) additive f32 -> (B, S, H) bf16."""
    B, S, threeH = qkv.shape
    H = threeH // 3
    vmem = _vmem_limit(S * threeH * 2, S * 4, S * H * 2)
    kernel = functools.partial(_attention_kernel, num_heads=num_heads,
                               head_dim=head_dim, scale=1.0 / math.sqrt(head_dim))
    return pl.pallas_call(
        kernel,
        out_shape=jax.ShapeDtypeStruct((B, S, H), qkv.dtype),
        grid=(B,),
        in_specs=[
            pl.BlockSpec((None, S, threeH), lambda b: (b, 0, 0)),
            pl.BlockSpec((None, 1, S), lambda b: (b, 0, 0)),
        ],
        out_specs=pl.BlockSpec((None, S, H), lambda b: (b, 0, 0)),
        compiler_params=pltpu.CompilerParams(
            dimension_semantics=("parallel",),
            vmem_limit_bytes=vmem),
    )(qkv, mask)


# ----------------------- pooler + classifier head (fused) -------------------

def _pooler_head_kernel(cls_ref, pw_ref, pb_ref, fw_ref, fb_ref, o_ref):
    """logits = tanh(cls @ pooler_w + pooler_b) @ fc_w + fc_b  (dropout = identity)."""
    pooled = jnp.tanh(jnp.dot(cls_ref[...], pw_ref[...],
                              preferred_element_type=jnp.float32) + pb_ref[...])
    logits = jnp.dot(pooled.astype(fw_ref.dtype), fw_ref[...],
                     preferred_element_type=jnp.float32) + fb_ref[...]
    o_ref[...] = logits.astype(o_ref.dtype)


def pooler_head(cls_tokens, pooler_w, pooler_b, fc_w, fc_b):
    """cls: (B, H) bf16 -> (B, NPAD) f32.  Single launch, no HBM round-trip of pooled."""
    B, H = cls_tokens.shape
    NPAD = fc_w.shape[1]
    vmem = _vmem_limit(B * H * 2, H * H * 2, H * 4, H * NPAD * 2, NPAD * 4, B * NPAD * 4)
    return pl.pallas_call(
        _pooler_head_kernel,
        out_shape=jax.ShapeDtypeStruct((B, NPAD), jnp.float32),
        compiler_params=pltpu.CompilerParams(vmem_limit_bytes=vmem),
    )(cls_tokens, pooler_w, pooler_b.reshape(1, H).astype(jnp.float32),
      fc_w, fc_b.reshape(1, NPAD).astype(jnp.float32))


# ------------------------------ Model (glue) -------------------------------

def encoder_layer(h, ext_mask, p, num_heads):
    B, S, H = h.shape
    dh = H // num_heads
    x = h.reshape(B * S, H)

    # Fused QKV projection: one [H, 3H] matmul (full-K strip, no reduction axis).
    qkv = linear(x, p["qkv_w"], p["qkv_b"])                       # (B*S, 3H) bf16
    ctx = attention(qkv.reshape(B, S, 3 * H), ext_mask, num_heads, dh)
    ctx = ctx.reshape(B * S, H)

    # Attention output projection + residual + LayerNorm fused.
    h1 = linear_res_ln(ctx, p["ao_w"], p["ao_b"], x, p["ln1_g"], p["ln1_b"])

    # FFN: GELU fused into the first matmul epilogue; residual + LN fused into the second.
    inter = linear(h1, p["ffn_w1"], p["ffn_b1"], activation="gelu")
    h2 = linear_res_ln(inter, p["ffn_w2"], p["ffn_b2"], h1, p["ln2_g"], p["ln2_b"])
    return h2.reshape(B, S, H)


def bert_classifier_forward(params, input_ids, attention_mask, num_heads, nclasses):
    B, S = input_ids.shape
    H = params["word_emb"].shape[1]

    # Embedding gather stays in XLA glue; the sum + LayerNorm is a fused Pallas kernel.
    we = jnp.take(params["word_emb"], input_ids, axis=0)                 # (B, S, H) f32
    pe = params["pos_emb"][:S]                                           # (S, H)
    te = params["type_emb"][0].reshape(1, H)                             # token_type_ids = 0
    h = embed_layernorm(we, pe, te, params["emb_ln_g"], params["emb_ln_b"])  # (B,S,H) bf16

    # Extended additive attention mask, (B, 1, S), indexed per-batch in the kernel.
    ext_mask = ((1.0 - attention_mask.astype(jnp.float32)) * MASK_NEG).reshape(B, 1, S)

    for layer_params in params["layers"]:
        h = encoder_layer(h, ext_mask, layer_params, num_heads)

    # Pooler (Linear + tanh on [CLS]) + dropout(identity in eval) + classifier head,
    # fused into a single kernel; head padded to 128 output lanes, sliced after.
    logits = pooler_head(h[:, 0, :], params["pooler_w"], params["pooler_b"],
                         params["fc_w"], params["fc_b"])
    return logits[:, :nclasses]


# ---------------------------- Deterministic init ----------------------------

def init_params(key, vocab, max_pos, hidden, intermediate, num_layers, nclasses):
    keys = iter(jax.random.split(key, 16 * num_layers + 16))

    def nxt(shape, dtype=jnp.bfloat16):
        return (0.02 * jax.random.normal(next(keys), shape, jnp.float32)).astype(dtype)

    npad = max(128, nclasses)  # pad classifier head to a lane-dense width
    fc_w = jnp.zeros((hidden, npad), jnp.float32)
    fc_w = fc_w.at[:, :nclasses].set(
        0.02 * jax.random.normal(next(keys), (hidden, nclasses), jnp.float32))

    params = {
        "word_emb": nxt((vocab, hidden), jnp.float32),
        "pos_emb": nxt((max_pos, hidden), jnp.float32),
        "type_emb": nxt((2, hidden), jnp.float32),
        "emb_ln_g": jnp.ones((hidden,), jnp.float32),
        "emb_ln_b": jnp.zeros((hidden,), jnp.float32),
        "pooler_w": nxt((hidden, hidden)),
        "pooler_b": jnp.zeros((hidden,), jnp.float32),
        "fc_w": fc_w.astype(jnp.bfloat16),
        "fc_b": jnp.zeros((npad,), jnp.float32),
        "layers": [],
    }
    for _ in range(num_layers):
        params["layers"].append({
            # Fused QKV weight [H, 3H] (q | k | v concatenated along columns).
            "qkv_w": nxt((hidden, 3 * hidden)),
            "qkv_b": jnp.zeros((3 * hidden,), jnp.float32),
            "ao_w": nxt((hidden, hidden)), "ao_b": jnp.zeros((hidden,), jnp.float32),
            "ln1_g": jnp.ones((hidden,), jnp.float32), "ln1_b": jnp.zeros((hidden,), jnp.float32),
            "ffn_w1": nxt((hidden, intermediate)), "ffn_b1": jnp.zeros((intermediate,), jnp.float32),
            "ffn_w2": nxt((intermediate, hidden)), "ffn_b2": jnp.zeros((hidden,), jnp.float32),
            "ln2_g": jnp.ones((hidden,), jnp.float32), "ln2_b": jnp.zeros((hidden,), jnp.float32),
        })
    return params


# ---------------------------------- main ------------------------------------

if __name__ == "__main__":
    # Small synthetic BERT config.
    BATCH, SEQ = 2, 8
    VOCAB, MAX_POS = 100, 16
    HIDDEN, INTERMEDIATE = 32, 64
    NUM_LAYERS, NUM_HEADS = 2, 4
    NCLASSES = 3

    root = jax.random.PRNGKey(0)
    k_params, k_ids = jax.random.split(root)

    params = init_params(k_params, VOCAB, MAX_POS, HIDDEN, INTERMEDIATE, NUM_LAYERS, NCLASSES)

    input_ids = jax.random.randint(k_ids, (BATCH, SEQ), 0, VOCAB, dtype=jnp.int32)
    attention_mask = jnp.array(
        [[1, 1, 1, 1, 1, 1, 1, 1],
         [1, 1, 1, 1, 1, 0, 0, 0]], dtype=jnp.int32)

    logits = bert_classifier_forward(params, input_ids, attention_mask, NUM_HEADS, NCLASSES)
    logits = jax.block_until_ready(logits)

    assert logits.shape == (BATCH, NCLASSES)
    assert logits.dtype == jnp.float32
    assert bool(jnp.all(jnp.isfinite(logits)))
    print("KERNEL_OK")
</pallas_src>

<mosaic_0001>
module attributes {stable_mosaic.version = 11 : i64} {
  func.func @_emb_ln_kernel(%arg0: i32, %arg1: memref<1x8x32xf32, #tpu.memory_space<vmem>>, %arg2: memref<8x32xf32, #tpu.memory_space<vmem>>, %arg3: memref<1x32xf32, #tpu.memory_space<vmem>>, %arg4: memref<1x32xf32, #tpu.memory_space<vmem>>, %arg5: memref<1x32xf32, #tpu.memory_space<vmem>>, %arg6: memref<1x8x32xbf16, #tpu.memory_space<vmem>>) attributes {dimension_semantics = [#tpu.dimension_semantics<parallel>], iteration_bounds = array<i64: 2>, scalar_prefetch = 0 : i64, scratch_operands = 0 : i64, tpu.core_type = #tpu.core_type<tc>, window_params = [{transform_indices = @transform_0, window_bounds = array<i64: 1, 8, 32>}, {pipeline_mode = #tpu.pipeline_mode<synchronous>, transform_indices = @transform_1, window_bounds = array<i64: 8, 32>}, {pipeline_mode = #tpu.pipeline_mode<synchronous>, transform_indices = @transform_2, window_bounds = array<i64: 1, 32>}, {pipeline_mode = #tpu.pipeline_mode<synchronous>, transform_indices = @transform_3, window_bounds = array<i64: 1, 32>}, {pipeline_mode = #tpu.pipeline_mode<synchronous>, transform_indices = @transform_4, window_bounds = array<i64: 1, 32>}, {transform_indices = @transform_5, window_bounds = array<i64: 1, 8, 32>}]} {
    %c0 = arith.constant 0 : index
    %c0_0 = arith.constant 0 : index
    %c0_1 = arith.constant 0 : index
    %0 = vector.load %arg1[%c0, %c0_0, %c0_1] : memref<1x8x32xf32, #tpu.memory_space<vmem>>, vector<1x8x32xf32>
    %1 = vector.shape_cast %0 : vector<1x8x32xf32> to vector<8x32xf32>
    %c0_2 = arith.constant 0 : index
    %c0_3 = arith.constant 0 : index
    %2 = vector.load %arg2[%c0_2, %c0_3] : memref<8x32xf32, #tpu.memory_space<vmem>>, vector<8x32xf32>
    %3 = arith.addf %1, %2 : vector<8x32xf32>
    %c0_4 = arith.constant 0 : index
    %c0_5 = arith.constant 0 : index
    %4 = vector.load %arg3[%c0_4, %c0_5] : memref<1x32xf32, #tpu.memory_space<vmem>>, vector<1x32xf32>
    %5 = vector.broadcast %4 : vector<1x32xf32> to vector<8x32xf32>
    %6 = arith.addf %3, %5 : vector<8x32xf32>
    %c0_6 = arith.constant 0 : index
    %c0_7 = arith.constant 0 : index
    %7 = vector.load %arg4[%c0_6, %c0_7] : memref<1x32xf32, #tpu.memory_space<vmem>>, vector<1x32xf32>
    %c0_8 = arith.constant 0 : index
    %c0_9 = arith.constant 0 : index
    %8 = vector.load %arg5[%c0_8, %c0_9] : memref<1x32xf32, #tpu.memory_space<vmem>>, vector<1x32xf32>
    %cst = arith.constant dense<0.000000e+00> : vector<8xf32>
    %9 = vector.multi_reduction <add>, %6, %cst [1] : vector<8x32xf32> to vector<8xf32>
    %10 = vector.shape_cast %9 : vector<8xf32> to vector<8x1xf32>
    %cst_10 = arith.constant 3.200000e+01 : f32
    %11 = vector.broadcast %cst_10 : f32 to vector<8x1xf32>
    %12 = arith.divf %10, %11 : vector<8x1xf32>
    %13 = vector.broadcast %12 : vector<8x1xf32> to vector<8x32xf32>
    %14 = arith.subf %6, %13 : vector<8x32xf32>
    %15 = arith.mulf %14, %14 : vector<8x32xf32>
    %cst_11 = arith.constant dense<0.000000e+00> : vector<8xf32>
    %16 = vector.multi_reduction <add>, %15, %cst_11 [1] : vector<8x32xf32> to vector<8xf32>
    %17 = vector.shape_cast %16 : vector<8xf32> to vector<8x1xf32>
    %cst_12 = arith.constant 3.200000e+01 : f32
    %18 = vector.broadcast %cst_12 : f32 to vector<8x1xf32>
    %19 = arith.divf %17, %18 : vector<8x1xf32>
    %cst_13 = arith.constant 9.99999996E-13 : f32
    %20 = vector.broadcast %cst_13 : f32 to vector<8x1xf32>
    %21 = arith.addf %19, %20 : vector<8x1xf32>
    %22 = math.rsqrt %21 : vector<8x1xf32>
    %23 = vector.broadcast %12 : vector<8x1xf32> to vector<8x32xf32>
    %24 = arith.subf %6, %23 : vector<8x32xf32>
    %25 = vector.broadcast %22 : vector<8x1xf32> to vector<8x32xf32>
    %26 = arith.mulf %24, %25 : vector<8x32xf32>
    %27 = vector.broadcast %7 : vector<1x32xf32> to vector<8x32xf32>
    %28 = arith.mulf %26, %27 : vector<8x32xf32>
    %29 = vector.broadcast %8 : vector<1x32xf32> to vector<8x32xf32>
    %30 = arith.addf %28, %29 : vector<8x32xf32>
    %31 = arith.truncf %30 : vector<8x32xf32> to vector<8x32xbf16>
    %c0_14 = arith.constant 0 : index
    %c0_15 = arith.constant 0 : index
    %c0_16 = arith.constant 0 : index
    %32 = vector.load %arg6[%c0_14, %c0_15, %c0_16] : memref<1x8x32xbf16, #tpu.memory_space<vmem>>, vector<1x8x32xbf16>
    %33 = vector.shape_cast %32 : vector<1x8x32xbf16> to vector<8x32xbf16>
    %34 = vector.shape_cast %31 : vector<8x32xbf16> to vector<1x8x32xbf16>
    tpu.vector_store %arg6[%c0_14, %c0_15, %c0_16], %34 {strides = array<i32>} : memref<1x8x32xbf16, #tpu.memory_space<vmem>>, vector<1x8x32xbf16>,
    return
  }
  func.func @transform_0(%arg0: i32) -> (i32, i32, i32) {
    %c0_i32 = arith.constant 0 : i32
    %c0_i32_0 = arith.constant 0 : i32
    %c0_i32_1 = arith.constant 0 : i32
    return %arg0, %c0_i32, %c0_i32_0 : i32, i32, i32
  }
  func.func @transform_1(%arg0: i32) -> (i32, i32) {
    %c0_i32 = arith.constant 0 : i32
    %c0_i32_0 = arith.constant 0 : i32
    %c0_i32_1 = arith.constant 0 : i32
    return %c0_i32, %c0_i32_0 : i32, i32
  }
  func.func @transform_2(%arg0: i32) -> (i32, i32) {
    %c0_i32 = arith.constant 0 : i32
    %c0_i32_0 = arith.constant 0 : i32
    %c0_i32_1 = arith.constant 0 : i32
    return %c0_i32, %c0_i32_0 : i32, i32
  }
  func.func @transform_3(%arg0: i32) -> (i32, i32) {
    %c0_i32 = arith.constant 0 : i32
    %c0_i32_0 = arith.constant 0 : i32
    %c0_i32_1 = arith.constant 0 : i32
    return %c0_i32, %c0_i32_0 : i32, i32
  }
  func.func @transform_4(%arg0: i32) -> (i32, i32) {
    %c0_i32 = arith.constant 0 : i32
    %c0_i32_0 = arith.constant 0 : i32
    %c0_i32_1 = arith.constant 0 : i32
    return %c0_i32, %c0_i32_0 : i32, i32
  }
  func.func @transform_5(%arg0: i32) -> (i32, i32, i32) {
    %c0_i32 = arith.constant 0 : i32
    %c0_i32_0 = arith.constant 0 : i32
    %c0_i32_1 = arith.constant 0 : i32
    return %arg0, %c0_i32, %c0_i32_0 : i32, i32, i32
  }
}

</mosaic_0001>

<llo_original>
// kernel: tpu_custom_call.1
$region0: #{tpu_custom_call.1}
  #allocation0 [shape = 'u32[]', space=smem, size = 0x4, offset = 0x4, fixed_abs, tag = 'smem constant byte address 0x4 - core index']
  #allocation1 [shape = 'u32[144,128]{1,0:T(1,128)}', space=vmem, size = 0x12000, scoped, tag = 'internal scratch']
  %s0 = inlined_call_operand.hbm [shape: f32[2,8,32], index: 0, kind: input, shape index: {}]
  %s1 = inlined_call_operand.hbm [shape: f32[8,32], index: 1, kind: input, shape index: {}]
  %s2 = inlined_call_operand.vmem [shape: f32[1,32], index: 2, kind: input, shape index: {}]
  %s3 = inlined_call_operand.vmem [shape: f32[1,32], index: 3, kind: input, shape index: {}]
  %s4 = inlined_call_operand.vmem [shape: f32[1,32], index: 4, kind: input, shape index: {}]
  %s5 = inlined_call_operand.hbm [shape: bf16[2,8,32], index: 5, kind: output, shape index: {}]
  %s6 = sld [smem:[#allocation0]]
  $region61: #{tpu_custom_call.1} parent=0
    _
  %s8 = ssub.s32 1, %s6
  %s9 = scalar_select 0, %s8, %s6
  $region1: #{tpu_custom_call.1} parent=0
    #allocation2 [shape = 'u8[8192]{0}', space=vmem, size = 0x2000, scoped, tag = 'input window, operand 0']
    #allocation3 [shape = 's32[2]{0}', space=sflag, size = 0x8, scoped, tag = 'scoped memory for tpu_custom_call.1']
    #allocation4 [shape = 's32[2]{0}', space=sflag, size = 0x8, scoped, tag = 'scoped memory for tpu_custom_call.1']
    #allocation5 [shape = 'u8[4096]{0}', space=vmem, size = 0x1000, scoped, tag = 'input window, operand 1, single buffered']
    #allocation6 [shape = 's32[1]{0}', space=sflag, size = 0x4, scoped, tag = 'scoped memory for tpu_custom_call.1']
    #allocation7 [shape = 'u8[4096]{0}', space=vmem, size = 0x1000, scoped, tag = 'output window, operand 0']
    %10 = vsyncpa [#allocation3], 0
    %s11 = scalar_lea.sflag [#allocation3], 1
    %12 = vsyncpa %s11, 0
    %13 = vsyncpa [#allocation6], 0
    %14 = vsyncpa [#allocation4], 0
    %s15 = scalar_lea.sflag [#allocation4], 1
    %16 = vsyncpa %s15, 0
    loop: start=0, step=1, limit=4
    $region2: #{tpu_custom_call.1} parent=1 // loop_pre_header
      _
    $region3: #{tpu_custom_call.1} parent=1 // loop_header
      %s18 = sphi 0, %s22
      %p19 = scmp.ge.s32.totalorder %s18, 4
      %s28 = sphi 0, %s30
      %s31 = sphi 0, %s28
      %s32 = sphi 0, %s31
      %s48 = sphi 0, %s32
      %s52 = sphi 0, %s52
      %s54 = sphi 0, %s52
      %s55 = sphi 0, %s54
      %s69 = sphi 0, %s55
      %s73 = sphi 0, %s73
      %s75 = sphi 0, %s73
      %s76 = sphi 0, %s75
      %s90 = sphi 0, %s76
      %s94 = sphi 0, %s94
      %s96 = sphi 0, %s94
      %s97 = sphi 0, %s96
      %s111 = sphi 0, %s97
      %s115 = sphi 0, %s115
      %s117 = sphi 0, %s115
      %s118 = sphi 0, %s117
      %s132 = sphi 0, %s118
      %s138 = sphi 0, %s140
      %s141 = sphi 0, %s138
      %s142 = sphi 0, %s141
      %s158 = sphi 0, %s142
    $region4: #{tpu_custom_call.1} parent=1 // loop_header_branch
      %21 = sbr.rel (%p19) target = $region8
    $region5: #{tpu_custom_call.1} parent=1 // loop_body
      %s23 = ssub.s32 %s18, 1
      %s24 = ssub.s32 %s18, 2
      %s25 = sadd.s32 %s18, 1
      %s26 = ssub.s32 %s18, %s25
      %p27 = scmp.eq.s32.totalorder %s26, 0
      %s29 = sadd.s32 %s28, 1
      %s30 = scalar_select %p27, %s28, %s29
      %p33 = pneg %p27
      %p34 = scmp.eq.s32.totalorder %s18, 1
      %p35 = por %p33, %p34
      %p36 = scmp.ne.s32.totalorder %s28, %s31
      %p37 = scmp.eq.s32.totalorder %s18, 0
      %p38 = por %p36, %p37
      %p39 = scmp.ne.s32.totalorder %s28, %s31
      %p40 = scmp.eq.s32.totalorder %s23, 1
      %p41 = por %p39, %p40
      %p42 = scmp.ne.s32.totalorder %s31, %s32
      %p43 = scmp.eq.s32.totalorder %s23, 0
      %p44 = por %p42, %p43
      %p45 = scmp.ne.s32.totalorder %s31, %s32
      %p46 = scmp.eq.s32.totalorder %s24, 1
      %p47 = por %p45, %p46
      %p49 = scmp.ne.s32.totalorder %s32, %s48
      %p50 = scmp.eq.s32.totalorder %s24, 0
      %p51 = por %p49, %p50
      %s53 = sadd.s32 %s52, 1
      %p56 = scmp.eq.s32.totalorder %s18, 1
      %p57 = scmp.ne.s32.totalorder %s52, %s54
      %p58 = scmp.eq.s32.totalorder %s18, 0
      %p59 = por %p57, %p58
      %p60 = scmp.ne.s32.totalorder %s52, %s54
      %p61 = scmp.eq.s32.totalorder %s23, 1
      %p62 = por %p60, %p61
      %p63 = scmp.ne.s32.totalorder %s54, %s55
      %p64 = scmp.eq.s32.totalorder %s23, 0
      %p65 = por %p63, %p64
      %p66 = scmp.ne.s32.totalorder %s54, %s55
      %p67 = scmp.eq.s32.totalorder %s24, 1
      %p68 = por %p66, %p67
      %p70 = scmp.ne.s32.totalorder %s55, %s69
      %p71 = scmp.eq.s32.totalorder %s24, 0
      %p72 = por %p70, %p71
      %s74 = sadd.s32 %s73, 1
      %p77 = scmp.eq.s32.totalorder %s18, 1
      %p78 = scmp.ne.s32.totalorder %s73, %s75
      %p79 = scmp.eq.s32.totalorder %s18, 0
      %p80 = por %p78, %p79
      %p81 = scmp.ne.s32.totalorder %s73, %s75
      %p82 = scmp.eq.s32.totalorder %s23, 1
      %p83 = por %p81, %p82
      %p84 = scmp.ne.s32.totalorder %s75, %s76
      %p85 = scmp.eq.s32.totalorder %s23, 0
      %p86 = por %p84, %p85
      %p87 = scmp.ne.s32.totalorder %s75, %s76
      %p88 = scmp.eq.s32.totalorder %s24, 1
      %p89 = por %p87, %p88
      %p91 = scmp.ne.s32.totalorder %s76, %s90
      %p92 = scmp.eq.s32.totalorder %s24, 0
      %p93 = por %p91, %p92
      %s95 = sadd.s32 %s94, 1
      %p98 = scmp.eq.s32.totalorder %s18, 1
      %p99 = scmp.ne.s32.totalorder %s94, %s96
      %p100 = scmp.eq.s32.totalorder %s18, 0
      %p101 = por %p99, %p100
      %p102 = scmp.ne.s32.totalorder %s94, %s96
      %p103 = scmp.eq.s32.totalorder %s23, 1
      %p104 = por %p102, %p103
      %p105 = scmp.ne.s32.totalorder %s96, %s97
      %p106 = scmp.eq.s32.totalorder %s23, 0
      %p107 = por %p105, %p106
      %p108 = scmp.ne.s32.totalorder %s96, %s97
      %p109 = scmp.eq.s32.totalorder %s24, 1
      %p110 = por %p108, %p109
      %p112 = scmp.ne.s32.totalorder %s97, %s111
      %p113 = scmp.eq.s32.totalorder %s24, 0
      %p114 = por %p112, %p113
      %s116 = sadd.s32 %s115, 1
      %p119 = scmp.eq.s32.totalorder %s18, 1
      %p120 = scmp.ne.s32.totalorder %s115, %s117
      %p121 = scmp.eq.s32.totalorder %s18, 0
      %p122 = por %p120, %p121
      %p123 = scmp.ne.s32.totalorder %s115, %s117
      %p124 = scmp.eq.s32.totalorder %s23, 1
      %p125 = por %p123, %p124
      %p126 = scmp.ne.s32.totalorder %s117, %s118
      %p127 = scmp.eq.s32.totalorder %s23, 0
      %p128 = por %p126, %p127
      %p129 = scmp.ne.s32.totalorder %s117, %s118
      %p130 = scmp.eq.s32.totalorder %s24, 1
      %p131 = por %p129, %p130
      %p133 = scmp.ne.s32.totalorder %s118, %s132
      %p134 = scmp.eq.s32.totalorder %s24, 0
      %p135 = por %p133, %p134
      %s136 = ssub.s32 %s18, %s25
      %p137 = scmp.eq.s32.totalorder %s136, 0
      %s139 = sadd.s32 %s138, 1
      %s140 = scalar_select %p137, %s138, %s139
      %p143 = pneg %p137
      %p144 = scmp.eq.s32.totalorder %s18, 1
      %p145 = por %p143, %p144
      %p146 = scmp.ne.s32.totalorder %s138, %s141
      %p147 = scmp.eq.s32.totalorder %s18, 0
      %p148 = por %p146, %p147
      %p149 = scmp.ne.s32.totalorder %s138, %s141
      %p150 = scmp.eq.s32.totalorder %s23, 1
      %p151 = por %p149, %p150
      %p152 = scmp.ne.s32.totalorder %s141, %s142
      %p153 = scmp.eq.s32.totalorder %s23, 0
      %p154 = por %p152, %p153
      %p155 = scmp.ne.s32.totalorder %s141, %s142
      %p156 = scmp.eq.s32.totalorder %s24, 1
      %p157 = por %p155, %p156
      %p159 = scmp.ne.s32.totalorder %s142, %s158
      %p160 = scmp.eq.s32.totalorder %s24, 0
      %p161 = por %p159, %p160
      %p162 = scmp.le.s32.totalorder 1, %s18
      %p163 = scmp.lt.s32.totalorder %s18, 3
      %p164 = pnand %p162, %p163
      %p165 = pneg %p164
      // Predicated region
      $region9: #{tpu_custom_call.1} parent=5 // pred_check
        _
      $region10: #{tpu_custom_call.1} parent=5 // pred_check_branch
        %167 = sbr.rel (%p164) target = $region12
      $region11: #{tpu_custom_call.1} parent=5 // pred_region
        %s168 = ssub.s32 %s18, 1
        // Predicated region
        $region13: #{tpu_custom_call.1} parent=11 // pred_check
          %p169 = pneg %p65
        $region14: #{tpu_custom_call.1} parent=11 // pred_check_branch
          %171 = sbr.rel (%p169) target = $region16
        $region15: #{tpu_custom_call.1} parent=11 // pred_region
          %s173 = ssub.s32 128, 128
          %174 = vsyncadd [#allocation6], %s173
          %s176 = sshll.u32 [#allocation5], 4
          %s177 = int_to_ptr.vmem [resolvable:$true] %s176
          %179 = dma.hbm_to_vmem [thread:$0]  %s1, 128, %s177, [#allocation6]
        $region16: #{tpu_custom_call.1} parent=11 // pred_fallthru
          _
        // Predicated region
        $region17: #{tpu_custom_call.1} parent=11 // pred_check
          %p180 = pneg %p86
        $region18: #{tpu_custom_call.1} parent=11 // pred_check_branch
          %182 = sbr.rel (%p180) target = $region20
        $region19: #{tpu_custom_call.1} parent=11 // pred_region
          _
        $region20: #{tpu_custom_call.1} parent=11 // pred_fallthru
          _
        // Predicated region
        $region21: #{tpu_custom_call.1} parent=11 // pred_check
          %p183 = pneg %p107
        $region22: #{tpu_custom_call.1} parent=11 // pred_check_branch
          %185 = sbr.rel (%p183) target = $region24
        $region23: #{tpu_custom_call.1} parent=11 // pred_region
          _
        $region24: #{tpu_custom_call.1} parent=11 // pred_fallthru
          _
        // Predicated region
        $region25: #{tpu_custom_call.1} parent=11 // pred_check
          %p186 = pneg %p128
        $region26: #{tpu_custom_call.1} parent=11 // pred_check_branch
          %188 = sbr.rel (%p186) target = $region28
        $region27: #{tpu_custom_call.1} parent=11 // pred_region
          _
        $region28: #{tpu_custom_call.1} parent=11 // pred_fallthru
          _
      $region12: #{tpu_custom_call.1} parent=5 // pred_fallthru
        _
      %p189 = scmp.lt.s32.totalorder %s18, 2
      // Predicated region
      $region29: #{tpu_custom_call.1} parent=5 // pred_check
        %p190 = pneg %p189
      $region30: #{tpu_custom_call.1} parent=5 // pred_check_branch
        %192 = sbr.rel (%p190) target = $region32
      $region31: #{tpu_custom_call.1} parent=5 // pred_region
        // Predicated region
        $region33: #{tpu_custom_call.1} parent=31 // pred_check
          %p193 = pneg %p38
        $region34: #{tpu_custom_call.1} parent=31 // pred_check_branch
          %195 = sbr.rel (%p193) target = $region36
        $region35: #{tpu_custom_call.1} parent=31 // pred_region
          %s196 = sand.u32 %s28, 1
          %s197 = scalar_lea.sflag [#allocation3], %s196
          %s198 = sand.u32 %s28, 1
          %s199 = smul.addr %s198, 8
          %s200 = scalar_lea.vmem [#allocation2], %s199
          %s202 = ssub.s32 128, 128
          %203 = vsyncadd %s197, %s202
          %s204 = smul.addr %s18, 128
          %s205 = scalar_lea.hbm %s0, %s204
          %s207 = sshll.u32 %s200, 4
          %s208 = int_to_ptr.vmem [resolvable:$true] %s207
          %210 = dma.hbm_to_vmem [thread:$0]  %s205, 128, %s208, %s197
        $region36: #{tpu_custom_call.1} parent=31 // pred_fallthru
          _
      $region32: #{tpu_custom_call.1} parent=5 // pred_fallthru
        _
      %p211 = scmp.le.s32.totalorder 1, %s18
      %p212 = scmp.lt.s32.totalorder %s18, 3
      %p213 = pnand %p211, %p212
      %p214 = pneg %p213
      // Predicated region
      $region37: #{tpu_custom_call.1} parent=5 // pred_check
        _
      $region38: #{tpu_custom_call.1} parent=5 // pred_check_branch
        %216 = sbr.rel (%p213) target = $region40
      $region39: #{tpu_custom_call.1} parent=5 // pred_region
        %s217 = ssub.s32 %s18, 1
        %s218 = sand.u32 %s31, 1
        %s219 = scalar_lea.sflag [#allocation3], %s218
        %s220 = sand.u32 %s31, 1
        %s221 = smul.addr %s220, 8
        %s222 = scalar_lea.vmem [#allocation2], %s221
        // Predicated region
        $region41: #{tpu_custom_call.1} parent=39 // pred_check
          %p223 = pneg %p44
        $region42: #{tpu_custom_call.1} parent=39 // pred_check_branch
          %225 = sbr.rel (%p223) target = $region44
        $region43: #{tpu_custom_call.1} parent=39 // pred_region
          %226 = dma.done %s219, 128
        $region44: #{tpu_custom_call.1} parent=39 // pred_fallthru
          _
        // Predicated region
        $region45: #{tpu_custom_call.1} parent=39 // pred_check
          %p227 = pneg %p65
        $region46: #{tpu_custom_call.1} parent=39 // pred_check_branch
          %229 = sbr.rel (%p227) target = $region48
        $region47: #{tpu_custom_call.1} parent=39 // pred_region
          %230 = dma.done [#allocation6], 128
        $region48: #{tpu_custom_call.1} parent=39 // pred_fallthru
          _
        %s231 = sand.u32 %s31, 1
        %s232 = scalar_lea.sflag [#allocation3], %s231
        %s233 = sand.u32 %s31, 1
        %s234 = smul.addr %s233, 8
        %s235 = scalar_lea.vmem [#allocation2], %s234
        %p236 = pneg %p44
        %p237 = pneg %p41
        %p238 = pneg %p65
        %p239 = pneg %p62
        %p240 = pneg %p86
        %p241 = pneg %p83
        %p242 = pneg %p107
        %p243 = pneg %p104
        %p244 = pneg %p128
        %p245 = pneg %p125
        %p246 = pneg %p154
        %p247 = pneg %p151
        %s248 = sand.u32 %s141, 1
        %s249 = scalar_lea.sflag [#allocation4], %s248
        %s250 = sand.u32 %s141, 1
        %s251 = smul.addr %s250, 4
        %s252 = scalar_lea.vmem [#allocation7], %s251
        %v253 = vld [vmem:[%s222] sm:$0xff]
        %v254 = vld [vmem:[#allocation5] sm:$0xff]
        %v255 = vadd.f32 %v253, %v254
        %v256 = vld [vmem:[%s2] sm:$0x1]
        %v258 = vlaneseq
        %v259 = vshrl.u32 %v258, 7
        %v260 = vsub.s32 0, %v259
        %v261 = vrot.slane %v256, %v260
        %v263 = vadd.f32 %v255, %v261
        %v264 = vld [vmem:[%s3] sm:$0x1]
        %v265 = vld [vmem:[%s4] sm:$0x1]
        %vm266 = vcmask 261120
        %v267 = vsel %vm266, %v263, 0.0
        %268 = vadd.xlane.f32.xlu0 %v267
        %v269 = vpop.xlane.xlu0 %268
        %v270 = vrcp.pop 32.0
        %v271 = vmul.f32 %v269, %v270
        %v272 = vsub.f32 %v263, %v271
        %v273 = vmul.f32 %v272, %v272
        %v274 = vsel %vm266, %v273, 0.0
        %275 = vadd.xlane.f32.xlu0 %v274
        %v276 = vpop.xlane.xlu0 %275
        %v277 = vmul.f32 %v276, %v270
        %v278 = vadd.f32 %v277, 1e-12
        %v279 = vrsqrt.pop %v278
        %v280 = vmul.f32 %v272, %v279
        %v282 = vlaneseq
        %v283 = vshrl.u32 %v282, 7
        %v284 = vsub.s32 0, %v283
        %v285 = vrot.slane %v264, %v284
        %v287 = vmul.f32 %v280, %v285
        %v289 = vlaneseq
        %v290 = vshrl.u32 %v289, 7
        %v291 = vsub.s32 0, %v290
        %v292 = vrot.slane %v265, %v291
        %v294 = vadd.f32 %v287, %v292
        %v295 = vpack.c.bf16 %v294, %v294
        %vm296 = vcmask 257024
        %297 = vst.msk [vmem:[%s252] sm:$0xf] %vm296, %v295
        %s298 = sand.u32 %s141, 1
        %s299 = scalar_lea.sflag [#allocation4], %s298
        %s300 = sand.u32 %s141, 1
        %s301 = smul.addr %s300, 4
        %s302 = scalar_lea.vmem [#allocation7], %s301
        // Predicated region
        $region49: #{tpu_custom_call.1} parent=39 // pred_check
          %p303 = pneg %p151
        $region50: #{tpu_custom_call.1} parent=39 // pred_check_branch
          %305 = sbr.rel (%p303) target = $region52
        $region51: #{tpu_custom_call.1} parent=39 // pred_region
          %s307 = ssub.s32 64, 64
          %308 = vsyncadd %s299, %s307
          %s309 = smul.addr %s23, 64
          %s310 = scalar_lea.hbm %s5, %s309
          %s312 = sshll.u32 %s302, 4
          %s313 = int_to_ptr.vmem [resolvable:$true] %s312
          %315 = dma.vmem_to_hbm [thread:$0]  %s313, 64, %s310, %s299
        $region52: #{tpu_custom_call.1} parent=39 // pred_fallthru
          _
      $region40: #{tpu_custom_call.1} parent=5 // pred_fallthru
        _
      %p316 = scmp.le.s32.totalorder 2, %s18
      // Predicated region
      $region53: #{tpu_custom_call.1} parent=5 // pred_check
        %p317 = pneg %p316
      $region54: #{tpu_custom_call.1} parent=5 // pred_check_branch
        %319 = sbr.rel (%p317) target = $region56
      $region55: #{tpu_custom_call.1} parent=5 // pred_region
        %s320 = ssub.s32 %s18, 2
        // Predicated region
        $region57: #{tpu_custom_call.1} parent=55 // pred_check
          %p321 = pneg %p157
        $region58: #{tpu_custom_call.1} parent=55 // pred_check_branch
          %323 = sbr.rel (%p321) target = $region60
        $region59: #{tpu_custom_call.1} parent=55 // pred_region
          %s324 = sand.u32 %s142, 1
          %s325 = scalar_lea.sflag [#allocation4], %s324
          %s326 = sand.u32 %s142, 1
          %s327 = smul.addr %s326, 4
          %s328 = scalar_lea.vmem [#allocation7], %s327
          %329 = dma.done %s325, 64
        $region60: #{tpu_custom_call.1} parent=55 // pred_fallthru
          _
      $region56: #{tpu_custom_call.1} parent=5 // pred_fallthru
        _
    $region6: #{tpu_custom_call.1} parent=1 // loop_footer
      %s22 = sadd.s32 1, %s18
    $region7: #{tpu_custom_call.1} parent=1 // loop_footer_branch
      %17 = sbr.rel target = $region3
    $region8: #{tpu_custom_call.1} parent=1 // loop_exit
      _
    %330 = vsyncpa [#allocation3], 1
    %s331 = scalar_lea.sflag [#allocation3], 1
    %332 = vsyncpa %s331, 1
    %333 = vsyncpa [#allocation6], 1
    %334 = vsyncpa [#allocation4], 1
    %s335 = scalar_lea.sflag [#allocation4], 1
    %336 = vsyncpa %s335, 1

</llo_original>
